<compile_context>
chip_gen: v7x
topology: tpu7x:2x2x1
jax: 0.10.0
libtpu: 0.0.40
codegen_flags: <defaults>
</compile_context>

<pallas_src>
import jax
import jax.numpy as jnp
from jax.experimental import pallas as pl
from jax.experimental.pallas import tpu as pltpu


def _round_up(x: int, m: int) -> int:
    return ((x + m - 1) // m) * m


def _default_num_shards() -> int:
    """Best-effort TensorCore count per device (2 on dual-TC parts).

    Falls back to 2: on single-TC chips the extra shard is just a cheap serial outer
    loop (the old pad-to-2-tiles granularity cost is gone now that the tail is masked
    in-kernel), while on dual-TC parts it doubles aggregate streaming bandwidth.
    """
    objs = []
    try:
        objs.append(jax.devices()[0])
    except Exception:
        pass
    try:
        objs.append(pltpu.get_tpu_info())
    except Exception:
        pass
    for obj in objs:
        for attr in ("num_cores", "core_count", "num_tensorcores", "tensorcores_per_chip"):
            try:
                v = int(getattr(obj, attr))
            except Exception:
                continue
            if v >= 1:
                return max(1, min(v, 8))
    return 2


def _make_kernel(batch: int, c_pad: int):
    """Kernel closed over the static true batch size and padded (power-of-two) class count."""
    valid_elems = batch * c_pad            # flat elements belonging to real samples
    log2_c = c_pad.bit_length() - 1        # c_pad is a power of two

    def kernel(out_ref, in_ref, sel_ref, acc_ref):
        i = pl.program_id(1)               # streaming ("arbitrary") axis

        @pl.when(i == 0)
        def _init():
            acc_ref[...] = jnp.zeros_like(acc_ref)

        out = out_ref[...].astype(jnp.float32)     # (tr, 128) interleaved-lane layout
        inp = in_ref[...].astype(jnp.float32)      # (tr, 128)
        sel = sel_ref[...].astype(jnp.float32)     # (tr, 128) one-hot over each sample's lanes

        tr, lw = out.shape                          # lw == 128

        # q = out*in at the target lane of each sample, 0 elsewhere.
        q = out * inp * sel

        # Per-sample sum of q (== win*odds), valid at each sample's c == 0 lane.
        # log2(C) "roll-left & add" steps; rolls stay inside each 128-lane row and a
        # sample's C lanes never straddle a row because C divides 128.
        gs = q
        for step in range(log2_c):
            k = 1 << step
            gs = gs + pltpu.roll(gs, shift=lw - k, axis=1)     # roll-left by k lanes

        # bet = |out[b,0] - out[b,1]|, valid at each sample's c == 0 lane.
        bet = jnp.abs(out - pltpu.roll(out, shift=lw - 1, axis=1))

        contrib = bet * (1.0 - gs)

        # Mask: keep only the c == 0 lane of *real* samples.  The mask uses the logical
        # (un-clamped) block position, so undefined data in partial/out-of-range blocks
        # never leaks in (jnp.where does not propagate NaNs from the unselected branch),
        # and padded samples contribute exactly zero.
        base_row = (pl.program_id(0) * pl.num_programs(1) + i) * tr
        row = jax.lax.broadcasted_iota(jnp.int32, (tr, lw), 0)
        lane = jax.lax.broadcasted_iota(jnp.int32, (tr, lw), 1)
        gidx = (base_row + row) * lw + lane        # int32: fine for B*C < 2**31
        mask = (lane % c_pad == 0) & (gidx < valid_elems)
        contrib = jnp.where(mask, contrib, 0.0)

        # Resident lane-dense per-shard accumulator.
        acc_ref[...] += jnp.sum(contrib, axis=0, keepdims=True)

    return kernel


def reward_loss(outputs: jax.Array,
                targets: jax.Array,
                inputs: jax.Array,
                *,
                tile_rows: int = 8192,
                num_shards: int | None = None,
                vmem_budget_bytes: int = 24 * 1024 * 1024) -> jax.Array:
    """Scalar f32 loss matching torch reward_loss.forward()."""
    assert outputs.ndim == 2 and inputs.ndim == 2 and targets.ndim == 1
    B, C = outputs.shape
    assert inputs.shape == (B, C) and targets.shape == (B,)
    assert 2 <= C <= 128
    # NOTE: out-of-range / negative targets silently select nothing (win*odds == 0);
    # PyTorch would raise an indexing error instead.

    if num_shards is None:
        num_shards = _default_num_shards()

    # --- Layout: free reshape of the row-major (B, C) buffers to (rows, 128). ----------
    c_pad = 1 << (C - 1).bit_length()        # next power of two -> divides 128
    group = 128 // c_pad                      # samples per 128-lane row
    b_pad = _round_up(B, group)

    pad_b, pad_c = b_pad - B, c_pad - C
    if pad_b or pad_c:
        # Only hit when B % (128/C) != 0 or C is not a power of two; this is the one
        # remaining copy of the big operands (zero-copy for typical aligned batches).
        outputs = jnp.pad(outputs, ((0, pad_b), (0, pad_c)))
        inputs = jnp.pad(inputs, ((0, pad_b), (0, pad_c)))

    n_rows = (b_pad * c_pad) // 128
    out_flat = outputs.reshape(n_rows, 128)   # free: row-major reinterpretation
    in_flat = inputs.reshape(n_rows, 128)

    # int8 one-hot selector in the same flat layout; padded samples match nothing.
    t = jnp.pad(targets.astype(jnp.int32), (0, pad_b), constant_values=-1)
    sel = (t[:, None] == jnp.arange(c_pad, dtype=jnp.int32)[None, :]).astype(jnp.int8)
    sel_flat = sel.reshape(n_rows, 128)

    # --- Tile sizing from the real double-buffered VMEM footprint. ----------------------
    itemsize = max(outputs.dtype.itemsize, inputs.dtype.itemsize)
    bytes_per_row = 128 * (2 * itemsize + 1)              # out + in (native) + sel (int8)
    tr = min(tile_rows, max(32, vmem_budget_bytes // (2 * bytes_per_row)))
    tr = max(32, (tr // 32) * 32)                          # packed-dtype friendly sublanes

    if n_rows <= tr:
        tr = n_rows                                        # single full-extent block
        shards = 1
    else:
        # Never stream blocks larger than one shard's share of the rows.
        tr = min(tr, _round_up(pl.cdiv(n_rows, num_shards), 32))
        shards = max(1, min(num_shards, pl.cdiv(n_rows, tr)))

    num_blocks = pl.cdiv(n_rows, tr)
    tiles_per_shard = pl.cdiv(num_blocks, shards)
    last_block = num_blocks - 1

    def in_map(s, i, _tps=tiles_per_shard, _last=last_block):
        # Clamp so a (rare) fully out-of-range logical block re-reads the last block;
        # the kernel's logical mask zeroes its contribution.
        return (jnp.minimum(s * _tps + i, _last), 0)

    in_spec = pl.BlockSpec((tr, 128), in_map)

    grid_spec = pltpu.PrefetchScalarGridSpec(
        num_scalar_prefetch=0,
        grid=(shards, tiles_per_shard),
        in_specs=[in_spec, in_spec, in_spec],
        # One resident lane-dense (1, 128) accumulator per shard.
        out_specs=pl.BlockSpec((1, 128), lambda s, i: (0, s)),
    )

    cost = pl.CostEstimate(
        flops=10 * B * C,
        transcendentals=0,
        bytes_accessed=2 * b_pad * c_pad * itemsize + b_pad * c_pad + shards * 128 * 4,
    )

    partials = pl.pallas_call(
        _make_kernel(B, c_pad),
        out_shape=jax.ShapeDtypeStruct((1, shards * 128), jnp.float32),
        grid_spec=grid_spec,
        compiler_params=pltpu.CompilerParams(
            dimension_semantics=("parallel", "arbitrary"),
            # <= v7x's 32 MiB scoped default; ~18 MiB actually used at the default tile.
            vmem_limit_bytes=32 * 1024 * 1024,
        ),
        cost_estimate=cost,
    )(out_flat, in_flat, sel_flat)

    # Tiny (1, shards*128) partial slab; single exact divide by the true batch size.
    return jnp.sum(partials) / jnp.float32(B)


def _reward_loss_ref(outputs, targets, inputs):
    # Pure-JAX reference mirroring the PyTorch forward.
    b = jnp.arange(outputs.shape[0])
    odds = inputs[b, targets]
    win = outputs[b, targets]
    bet = jnp.abs(outputs[:, 0] - outputs[:, 1])
    return -jnp.mean(win * odds * bet) + jnp.mean(bet)


if __name__ == "__main__":
    key = jax.random.PRNGKey(0)
    k1, k2, k3 = jax.random.split(key, 3)

    # Primary small example (B=8 samples, C=4 output classes; C >= 2 for bet_amount).
    B, C = 8, 4
    outputs = jax.random.normal(k1, (B, C), dtype=jnp.float32)
    inputs = jax.random.uniform(k2, (B, C), dtype=jnp.float32, minval=1.0, maxval=5.0)
    targets = jax.random.randint(k3, (B,), 0, C, dtype=jnp.int32)

    loss = reward_loss(outputs, targets, inputs)
    jax.block_until_ready(loss)

    ref = _reward_loss_ref(outputs, targets, inputs)
    assert jnp.allclose(loss, ref, rtol=1e-5, atol=1e-5), (loss, ref)

    # Secondary consistency check: unaligned batch with a small forced tile so the
    # multi-block streaming path, both shard accumulators, the partial tail block and
    # the out-of-range block clamp are all exercised.
    B2, C2 = 10000, 4
    outputs2 = jax.random.normal(k1, (B2, C2), dtype=jnp.float32)
    inputs2 = jax.random.uniform(k2, (B2, C2), dtype=jnp.float32, minval=1.0, maxval=5.0)
    targets2 = jax.random.randint(k3, (B2,), 0, C2, dtype=jnp.int32)
    loss2 = reward_loss(outputs2, targets2, inputs2, tile_rows=64, num_shards=2)
    jax.block_until_ready(loss2)
    ref2 = _reward_loss_ref(outputs2, targets2, inputs2)
    assert jnp.allclose(loss2, ref2, rtol=1e-3, atol=1e-3), (loss2, ref2)

    print("KERNEL_OK")
</pallas_src>

<mosaic_0001>
module attributes {stable_mosaic.version = 11 : i64} {
  func.func @kernel(%arg0: i32, %arg1: i32, %arg2: memref<1x128xf32, #tpu.memory_space<vmem>>, %arg3: memref<1x128xf32, #tpu.memory_space<vmem>>, %arg4: memref<1x128xi8, #tpu.memory_space<vmem>>, %arg5: memref<1x128xf32, #tpu.memory_space<vmem>>) attributes {dimension_semantics = [#tpu.dimension_semantics<parallel>, #tpu.dimension_semantics<arbitrary>], iteration_bounds = array<i64: 1, 1>, scalar_prefetch = 0 : i64, scratch_operands = 0 : i64, tpu.core_type = #tpu.core_type<tc>, window_params = [{transform_indices = @transform_0, window_bounds = array<i64: 1, 128>}, {transform_indices = @transform_1, window_bounds = array<i64: 1, 128>}, {transform_indices = @transform_2, window_bounds = array<i64: 1, 128>}, {transform_indices = @transform_3, window_bounds = array<i64: 1, 128>}]} {
    %c0_i32 = arith.constant 0 : i32
    %0 = arith.cmpi eq, %arg1, %c0_i32 : i32
    %1 = arith.extui %0 : i1 to i32
    %c0_i32_0 = arith.constant 0 : i32
    %2 = arith.cmpi ne, %1, %c0_i32_0 : i32
    scf.if %2 {
      %cst_20 = arith.constant 0.000000e+00 : f32
      %57 = vector.broadcast %cst_20 : f32 to vector<1x128xf32>
      %c0_21 = arith.constant 0 : index
      %c0_22 = arith.constant 0 : index
      %58 = vector.load %arg5[%c0_21, %c0_22] : memref<1x128xf32, #tpu.memory_space<vmem>>, vector<1x128xf32>
      tpu.vector_store %arg5[%c0_21, %c0_22], %57 {strides = array<i32>} : memref<1x128xf32, #tpu.memory_space<vmem>>, vector<1x128xf32>,
    } else {
    }
    %c0 = arith.constant 0 : index
    %c0_1 = arith.constant 0 : index
    %3 = vector.load %arg2[%c0, %c0_1] : memref<1x128xf32, #tpu.memory_space<vmem>>, vector<1x128xf32>
    %c0_2 = arith.constant 0 : index
    %c0_3 = arith.constant 0 : index
    %4 = vector.load %arg3[%c0_2, %c0_3] : memref<1x128xf32, #tpu.memory_space<vmem>>, vector<1x128xf32>
    %c0_4 = arith.constant 0 : index
    %c0_5 = arith.constant 0 : index
    %5 = vector.load %arg4[%c0_4, %c0_5] : memref<1x128xi8, #tpu.memory_space<vmem>>, vector<1x128xi8>
    %6 = arith.sitofp %5 : vector<1x128xi8> to vector<1x128xf32>
    %7 = arith.mulf %3, %4 : vector<1x128xf32>
    %8 = arith.mulf %7, %6 : vector<1x128xf32>
    %c127_i32 = arith.constant 127 : i32
    %9 = tpu.dynamic_rotate %8 by %c127_i32 dim 1 : vector<1x128xf32>, i32 -> vector<1x128xf32>
    %10 = arith.addf %8, %9 : vector<1x128xf32>
    %c126_i32 = arith.constant 126 : i32
    %11 = tpu.dynamic_rotate %10 by %c126_i32 dim 1 : vector<1x128xf32>, i32 -> vector<1x128xf32>
    %12 = arith.addf %10, %11 : vector<1x128xf32>
    %c127_i32_6 = arith.constant 127 : i32
    %13 = tpu.dynamic_rotate %3 by %c127_i32_6 dim 1 : vector<1x128xf32>, i32 -> vector<1x128xf32>
    %14 = arith.subf %3, %13 : vector<1x128xf32>
    %15 = math.absf %14 : vector<1x128xf32>
    %cst = arith.constant 1.000000e+00 : f32
    %16 = vector.broadcast %cst : f32 to vector<1x128xf32>
    %17 = arith.subf %16, %12 : vector<1x128xf32>
    %18 = arith.mulf %15, %17 : vector<1x128xf32>
    %c1_i32 = arith.constant 1 : i32
    %19 = arith.muli %arg0, %c1_i32 : i32
    %20 = arith.addi %19, %arg1 : i32
    %c1_i32_7 = arith.constant 1 : i32
    %21 = arith.muli %20, %c1_i32_7 : i32
    %22 = tpu.iota {dimensions = array<i32: 0>} : vector<1x128xi32>
    %23 = tpu.iota {dimensions = array<i32: 1>} : vector<1x128xi32>
    %24 = vector.broadcast %21 : i32 to vector<1x128xi32>
    %25 = arith.addi %24, %22 : vector<1x128xi32>
    %c128_i32 = arith.constant 128 : i32
    %26 = vector.broadcast %c128_i32 : i32 to vector<1x128xi32>
    %27 = arith.muli %25, %26 : vector<1x128xi32>
    %28 = arith.addi %27, %23 : vector<1x128xi32>
    %c4_i32 = arith.constant 4 : i32
    %c0_i32_8 = arith.constant 0 : i32
    %29 = arith.cmpi eq, %c4_i32, %c0_i32_8 : i32
    %c1_i32_9 = arith.constant 1 : i32
    %30 = arith.select %29, %c1_i32_9, %c4_i32 : i32
    %31 = vector.broadcast %30 : i32 to vector<1x128xi32>
    %32 = arith.remsi %23, %31 : vector<1x128xi32>
    %c0_i32_10 = arith.constant 0 : i32
    %33 = vector.broadcast %c0_i32_10 : i32 to vector<1x128xi32>
    %34 = arith.cmpi ne, %32, %33 : vector<1x128xi32>
    %c0_i32_11 = arith.constant 0 : i32
    %35 = vector.broadcast %c0_i32_11 : i32 to vector<1x128xi32>
    %36 = arith.cmpi slt, %32, %35 : vector<1x128xi32>
    %c0_i32_12 = arith.constant 0 : i32
    %37 = arith.cmpi slt, %30, %c0_i32_12 : i32
    %38 = vector.broadcast %37 : i1 to vector<1x128xi1>
    %39 = vector.broadcast %38 : vector<1x128xi1> to vector<1x128xi1>
    %40 = arith.xori %36, %39 : vector<1x128xi1>
    %41 = arith.andi %40, %34 : vector<1x128xi1>
    %42 = vector.broadcast %30 : i32 to vector<1x128xi32>
    %43 = arith.addi %32, %42 : vector<1x128xi32>
    %44 = arith.select %41, %43, %32 : vector<1x128xi1>, vector<1x128xi32>
    %c0_i32_13 = arith.constant 0 : i32
    %45 = vector.broadcast %c0_i32_13 : i32 to vector<1x128xi32>
    %46 = arith.cmpi eq, %44, %45 : vector<1x128xi32>
    %c32_i32 = arith.constant 32 : i32
    %47 = vector.broadcast %c32_i32 : i32 to vector<1x128xi32>
    %48 = arith.cmpi slt, %28, %47 : vector<1x128xi32>
    %49 = arith.andi %46, %48 : vector<1x128xi1>
    %cst_14 = arith.constant 0.000000e+00 : f32
    %50 = vector.broadcast %cst_14 : f32 to vector<1x128xf32>
    %51 = arith.select %49, %18, %50 : vector<1x128xi1>, vector<1x128xf32>
    %c0_15 = arith.constant 0 : index
    %c0_16 = arith.constant 0 : index
    %52 = vector.load %arg5[%c0_15, %c0_16] : memref<1x128xf32, #tpu.memory_space<vmem>>, vector<1x128xf32>
    %cst_17 = arith.constant dense<0.000000e+00> : vector<128xf32>
    %53 = vector.multi_reduction <add>, %51, %cst_17 [0] : vector<1x128xf32> to vector<128xf32>
    %54 = vector.shape_cast %53 : vector<128xf32> to vector<1x128xf32>
    %55 = arith.addf %52, %54 : vector<1x128xf32>
    %c0_18 = arith.constant 0 : index
    %c0_19 = arith.constant 0 : index
    %56 = vector.load %arg5[%c0_18, %c0_19] : memref<1x128xf32, #tpu.memory_space<vmem>>, vector<1x128xf32>
    tpu.vector_store %arg5[%c0_18, %c0_19], %55 {strides = array<i32>} : memref<1x128xf32, #tpu.memory_space<vmem>>, vector<1x128xf32>,
    return
  }
  func.func @transform_0(%arg0: i32, %arg1: i32) -> (i32, i32) {
    %c1_i32 = arith.constant 1 : i32
    %0 = arith.muli %arg0, %c1_i32 : i32
    %1 = arith.addi %0, %arg1 : i32
    %c0_i32 = arith.constant 0 : i32
    %2 = arith.minsi %1, %c0_i32 : i32
    %c0_i32_0 = arith.constant 0 : i32
    %c0_i32_1 = arith.constant 0 : i32
    return %2, %c0_i32_0 : i32, i32
  }
  func.func @transform_1(%arg0: i32, %arg1: i32) -> (i32, i32) {
    %c1_i32 = arith.constant 1 : i32
    %0 = arith.muli %arg0, %c1_i32 : i32
    %1 = arith.addi %0, %arg1 : i32
    %c0_i32 = arith.constant 0 : i32
    %2 = arith.minsi %1, %c0_i32 : i32
    %c0_i32_0 = arith.constant 0 : i32
    %c0_i32_1 = arith.constant 0 : i32
    return %2, %c0_i32_0 : i32, i32
  }
  func.func @transform_2(%arg0: i32, %arg1: i32) -> (i32, i32) {
    %c1_i32 = arith.constant 1 : i32
    %0 = arith.muli %arg0, %c1_i32 : i32
    %1 = arith.addi %0, %arg1 : i32
    %c0_i32 = arith.constant 0 : i32
    %2 = arith.minsi %1, %c0_i32 : i32
    %c0_i32_0 = arith.constant 0 : i32
    %c0_i32_1 = arith.constant 0 : i32
    return %2, %c0_i32_0 : i32, i32
  }
  func.func @transform_3(%arg0: i32, %arg1: i32) -> (i32, i32) {
    %c0_i32 = arith.constant 0 : i32
    %c0_i32_0 = arith.constant 0 : i32
    return %c0_i32, %arg0 : i32, i32
  }
}

</mosaic_0001>

<llo_original>
// kernel: tpu_custom_call.1
$region0: #{tpu_custom_call.1}
  #allocation0 [shape = 'u32[]', space=smem, size = 0x4, offset = 0x4, fixed_abs, tag = 'smem constant byte address 0x4 - core index']
  #allocation1 [shape = 'u32[144,128]{1,0:T(1,128)}', space=vmem, size = 0x12000, scoped, tag = 'internal scratch']
  %s0 = inlined_call_operand.hbm [shape: f32[1,128], index: 0, kind: input, shape index: {}]
  %s1 = inlined_call_operand.vmem [shape: f32[1,128], index: 1, kind: input, shape index: {}]
  %s2 = inlined_call_operand.vmem [shape: s8[1,128], index: 2, kind: input, shape index: {}]
  %s3 = inlined_call_operand.hbm [shape: f32[1,128], index: 3, kind: output, shape index: {}]
  %s4 = sld [smem:[#allocation0]]
  $region30: #{tpu_custom_call.1} parent=0
    _
  %s6 = ssub.s32 1, %s4
  %s7 = scalar_select 0, %s6, %s4
  $region1: #{tpu_custom_call.1} parent=0
    #allocation2 [shape = 'u8[512]{0}', space=vmem, size = 0x400, scoped, tag = 'input window, operand 0, single buffered']
    #allocation3 [shape = 's32[1]{0}', space=sflag, size = 0x4, scoped, tag = 'scoped memory for tpu_custom_call.1']
    #allocation4 [shape = 's32[1]{0}', space=sflag, size = 0x4, scoped, tag = 'scoped memory for tpu_custom_call.1']
    #allocation5 [shape = 'u8[512]{0}', space=vmem, size = 0x400, scoped, tag = 'output window, operand 0, single buffered']
    %8 = vsyncpa [#allocation3], 0
    %9 = vsyncpa [#allocation4], 0
    // Predicated region
    $region2: #{tpu_custom_call.1} parent=1 // pred_check
      _
    $region3: #{tpu_custom_call.1} parent=1 // pred_check_branch
      %11 = sbr.rel (0) target = $region5
    $region4: #{tpu_custom_call.1} parent=1 // pred_region
      %s12 = sadd.s32 0, 0
      %p13 = scmp.lt.s32.totalorder %s12, 0
      %s14 = scalar_select %p13, %s12, 0
      %s16 = ssub.s32 16, 16
      %17 = vsyncadd [#allocation3], %s16
      %s18 = smul.addr %s14, 16
      %s19 = scalar_lea.hbm %s0, %s18
      %s21 = sshll.u32 [#allocation2], 4
      %s22 = int_to_ptr.vmem [resolvable:$true] %s21
      %24 = dma.hbm_to_vmem [thread:$0]  %s19, 16, %s22, [#allocation3]
    $region5: #{tpu_custom_call.1} parent=1 // pred_fallthru
      _
    // Predicated region
    $region6: #{tpu_custom_call.1} parent=1 // pred_check
      _
    $region7: #{tpu_custom_call.1} parent=1 // pred_check_branch
      %26 = sbr.rel (0) target = $region9
    $region8: #{tpu_custom_call.1} parent=1 // pred_region
      %s27 = sadd.s32 0, 0
      %p28 = scmp.lt.s32.totalorder %s27, 0
      %s29 = scalar_select %p28, %s27, 0
      %p30 = scmp.lt.s32.totalorder %s29, 0
      %s31 = scalar_select %p30, %s29, 0
      %s32 = scalar_lea.vmem %s1, %s31
      %s33 = sadd.s32 0, 0
      %p34 = scmp.lt.s32.totalorder %s33, 0
      %s35 = scalar_select %p34, %s33, 0
    $region9: #{tpu_custom_call.1} parent=1 // pred_fallthru
      _
    // Predicated region
    $region10: #{tpu_custom_call.1} parent=1 // pred_check
      _
    $region11: #{tpu_custom_call.1} parent=1 // pred_check_branch
      %37 = sbr.rel (0) target = $region13
    $region12: #{tpu_custom_call.1} parent=1 // pred_region
      %s38 = sadd.s32 0, 0
      %p39 = scmp.lt.s32.totalorder %s38, 0
      %s40 = scalar_select %p39, %s38, 0
      %p41 = scmp.lt.s32.totalorder %s40, 0
      %s42 = scalar_select %p41, %s40, 0
      %s43 = scalar_lea.vmem %s2, %s42
      %s44 = sadd.s32 0, 0
      %p45 = scmp.lt.s32.totalorder %s44, 0
      %s46 = scalar_select %p45, %s44, 0
    $region13: #{tpu_custom_call.1} parent=1 // pred_fallthru
      _
    // Predicated region
    $region14: #{tpu_custom_call.1} parent=1 // pred_check
      _
    $region15: #{tpu_custom_call.1} parent=1 // pred_check_branch
      %48 = sbr.rel (0) target = $region17
    $region16: #{tpu_custom_call.1} parent=1 // pred_region
      %49 = dma.done [#allocation3], 16
    $region17: #{tpu_custom_call.1} parent=1 // pred_fallthru
      _
    %s50 = sadd.s32 0, 0
    %p51 = scmp.lt.s32.totalorder %s50, 0
    %s52 = scalar_select %p51, %s50, 0
    %p53 = scmp.lt.s32.totalorder %s52, 0
    %s54 = scalar_select %p53, %s52, 0
    %s55 = scalar_lea.vmem %s1, %s54
    %s56 = sadd.s32 0, 0
    %p57 = scmp.lt.s32.totalorder %s56, 0
    %s58 = scalar_select %p57, %s56, 0
    %p59 = scmp.lt.s32.totalorder %s58, 0
    %s60 = scalar_select %p59, %s58, 0
    %s61 = scalar_lea.vmem %s2, %s60
    %s62 = sadd.s32 0, 0
    %p63 = scmp.lt.s32.totalorder %s62, 0
    %s64 = scalar_select %p63, %s62, 0
    %s65 = sadd.s32 0, 0
    %p66 = scmp.lt.s32.totalorder %s65, 0
    %s67 = scalar_select %p66, %s65, 0
    %p68 = scmp.lt.s32.totalorder %s67, 0
    %s69 = scalar_select %p68, %s67, 0
    %s70 = scalar_lea.vmem %s1, %s69
    %s71 = sadd.s32 0, 0
    %p72 = scmp.lt.s32.totalorder %s71, 0
    %s73 = scalar_select %p72, %s71, 0
    %s74 = sadd.s32 0, 0
    %p75 = scmp.lt.s32.totalorder %s74, 0
    %s76 = scalar_select %p75, %s74, 0
    %p77 = scmp.lt.s32.totalorder %s76, 0
    %s78 = scalar_select %p77, %s76, 0
    %s79 = scalar_lea.vmem %s2, %s78
    %s80 = sadd.s32 0, 0
    %p81 = scmp.lt.s32.totalorder %s80, 0
    %s82 = scalar_select %p81, %s80, 0
    %p83 = scmp.eq.s32.totalorder 0, 0
    // Predicated region
    $region18: #{tpu_custom_call.1} parent=1 // pred_check
      %p84 = pneg %p83
    $region19: #{tpu_custom_call.1} parent=1 // pred_check_branch
      %86 = sbr.rel (%p84) target = $region21
    $region20: #{tpu_custom_call.1} parent=1 // pred_region
      %87 = vst [vmem:[#allocation5] sm:$0x1] 0.0
    $region21: #{tpu_custom_call.1} parent=1 // pred_fallthru
      _
    %v88 = vld [vmem:[#allocation2] sm:$0x1]
    %v89 = vld [vmem:[%s70] sm:$0x1]
    %v90 = vld [vmem:[%s79] sm:$0x1]
    %v91 = vunpack.c.0.s8 %v90
    %v92 = vcvt.s32.f32 %v91
    %v93 = vmul.f32 %v88, %v89
    %v94 = vmul.f32 %v93, %v92
    %95 = vrot.lane.b32.xlu0 %v94, 127
    %v96 = vpop.permute.xlu0 %95
    %v97 = vadd.f32 %v94, %v96
    %98 = vrot.lane.b32.xlu0 %v97, 126
    %v99 = vpop.permute.xlu0 %98
    %v100 = vadd.f32 %v97, %v99
    %101 = vrot.lane.b32.xlu0 %v88, 127
    %v102 = vpop.permute.xlu0 %101
    %v103 = vsub.f32 %v88, %v102
    %v104 = vand.u32 2147483647, %v103
    %v105 = vsub.f32 1.0, %v100
    %v106 = vmul.f32 %v104, %v105
    %s107 = sadd.s32 0, 0
    %v108 = vlaneseq
    %v109 = vshrl.u32 %v108, 7
    %v110 = vlaneseq
    %v111 = vand.u32 %v110, 127
    %v112 = vstv %s107
    %v113 = vadd.s32 %v112, %v109
    %v114 = vmul.u32 %v113, 128
    %v115 = vadd.s32 %v114, %v111
    %vm116 = vcmp.lt.s32.totalorder %v111, 0
    %v117 = vsub.s32 0, %v111
    %v118 = vsel %vm116, %v117, %v111
    %v119 = vshrl.u32 %v118, 2
    %v120 = vand.u32 %v118, 3
    %v121 = vsub.s32 0, %v120
    %v122 = vsel %vm116, %v121, %v120
    %vm123 = vcmp.ne.s32.totalorder %v122, 0
    %vm124 = vcmp.lt.s32.totalorder %v122, 0
    %vm125 = vmand %vm124, %vm123
    %v126 = vadd.s32 %v122, 4
    %v127 = vsel %vm125, %v126, %v122
    %vm128 = vcmp.eq.s32.totalorder %v127, 0
    %vm129 = vcmp.lt.s32.totalorder %v115, 32
    %vm130 = vmand %vm128, %vm129
    %v131 = vsel %vm130, %v106, 0.0
    %v132 = vld [vmem:[#allocation5] sm:$0x1]
    %v133 = vadd.f32 %v131, 0.0
    %v134 = vadd.f32 %v132, %v133
    %135 = vst [vmem:[#allocation5] sm:$0x1] %v134
    // Predicated region
    $region22: #{tpu_custom_call.1} parent=1 // pred_check
      _
    $region23: #{tpu_custom_call.1} parent=1 // pred_check_branch
      %137 = sbr.rel (0) target = $region25
    $region24: #{tpu_custom_call.1} parent=1 // pred_region
      %s139 = ssub.s32 16, 16
      %140 = vsyncadd [#allocation4], %s139
      %s142 = sshll.u32 [#allocation5], 4
      %s143 = int_to_ptr.vmem [resolvable:$true] %s142
      %145 = dma.vmem_to_hbm [thread:$0]  %s143, 16, %s3, [#allocation4]
    $region25: #{tpu_custom_call.1} parent=1 // pred_fallthru
      _
    // Predicated region
    $region26: #{tpu_custom_call.1} parent=1 // pred_check
      _
    $region27: #{tpu_custom_call.1} parent=1 // pred_check_branch
      %147 = sbr.rel (0) target = $region29
    $region28: #{tpu_custom_call.1} parent=1 // pred_region
      %148 = dma.done [#allocation4], 16
    $region29: #{tpu_custom_call.1} parent=1 // pred_fallthru
      _
    %149 = vsyncpa [#allocation3], 1
    %150 = vsyncpa [#allocation4], 1

</llo_original>
